<compile_context>
chip_gen: v5e
topology: v5e:2x2
jax: 0.10.0
libtpu: 0.0.40
codegen_flags: <defaults>
</compile_context>

<pallas_src>
import math
import functools

import jax
import jax.numpy as jnp
from jax.experimental import pallas as pl
from jax.experimental.pallas import tpu as pltpu

_MIB = 1024 * 1024


def build_sinusoidal_pe(d_model: int, max_seq_length: int) -> jnp.ndarray:
    """Deterministic PE table, identical to the torch __init__ math. Shape (1, S, D)."""
    position = jnp.arange(0, max_seq_length, dtype=jnp.float32)[:, None]            # (S, 1)
    div_term = jnp.exp(
        jnp.arange(0, d_model, 2, dtype=jnp.float32) * (-math.log(10000.0) / d_model)
    )                                                                                 # (D/2,)
    pe = jnp.zeros((max_seq_length, d_model), dtype=jnp.float32)
    pe = pe.at[:, 0::2].set(jnp.sin(position * div_term))
    pe = pe.at[:, 1::2].set(jnp.cos(position * div_term))
    return pe[None, :, :]                                                             # (1, S, D)


def _pe_kernel(seed_ref, x_ref, pe_ref, o_ref, *,
               drop_threshold: int, inv_keep: float, training: bool):
    # x_ref: (block_b, TS, lane); pe_ref: (1, TS, lane) -> broadcast add over batch.
    # f32 compute in-register; PE already arrives narrowed to x's storage dtype.
    y = x_ref[...].astype(jnp.float32) + pe_ref[...].astype(jnp.float32)
    if training and drop_threshold > 0:
        # Unique, well-mixed PRNG stream per (row-tile, batch) grid step.
        pltpu.prng_seed(seed_ref[0], pl.program_id(0), pl.program_id(1))
        bits = pltpu.prng_random_bits(y.shape)
        if bits.dtype != jnp.uint32:
            bits = pltpu.bitcast(bits, jnp.uint32)
        # Inverted dropout: keep iff bits >= round(p * 2^32); fold scale into select.
        keep = bits >= jnp.uint32(drop_threshold)
        y = jnp.where(keep, y * inv_keep, 0.0)
    o_ref[...] = y.astype(o_ref.dtype)


def positional_encoding(x, pe, *, p: float = 0.1, training: bool = False, seed: int = 0,
                        per_step_bytes: int | None = None, donate_x: bool = False):
    """x: (B, S, D); pe: (1, S, D) float32 table. Returns (B, S, D) in x.dtype."""
    B, S, D = x.shape
    assert pe.shape == (1, S, D), "forward semantics require S == max_seq_length"

    # Stream PE at x's width (halves PE bytes for bf16 activations); keep f32
    # only for non-float inputs (not expected for this module).
    if jnp.issubdtype(x.dtype, jnp.floating):
        pe = pe.astype(x.dtype)
    else:
        pe = pe.astype(jnp.float32)

    # ---- lane-dense layout selection -------------------------------------------------
    pad = 0
    if D % 128 == 0:
        lane, L = D, S
        xr, per = x, pe
    elif (S * D) % 128 == 0:
        lane = 128
        L = (S * D) // 128
        xr = x.reshape(B, L, lane)
        per = pe.reshape(1, L, lane)
    else:
        pad = (-D) % 128
        if pad <= max(8, D // 4):
            # Modest zero-pad -> full-width stores beat masked vst.msk on the store path.
            xr = jnp.pad(x, ((0, 0), (0, 0), (0, pad)))
            per = jnp.pad(pe, ((0, 0), (0, 0), (0, pad)))
            lane, L = D + pad, S
        else:
            # Masked-store fallback (still correct, just slower stores).
            pad = 0
            lane, L = D, S
            xr, per = x, pe

    x_item = jnp.dtype(xr.dtype).itemsize
    pe_item = jnp.dtype(per.dtype).itemsize
    # Sublane pack of the narrowest dtype touching the tile (f32: 8, bf16: 16, i8: 32).
    spack = max(8, 32 // min(x_item, pe_item))

    # ---- per-step byte budget across ALL streams (x + out + pe) ----------------------
    if per_step_bytes is None:
        # Bigger tiles amortize the ~0.35us/grid-step overhead (matters most on v7x at
        # 3.2 TB/s); training keeps extra headroom for the PRNG-bits/mask intermediates.
        per_step_bytes = (12 if (training and p > 0.0) else 16) * _MIB

    row_bytes = lane * (2 * x_item + pe_item)                    # one ts-row of x+out+pe
    whole_bytes = B * L * lane * 2 * x_item + L * lane * pe_item

    if whole_bytes <= per_step_bytes:
        # Tiny problem: one grid step, fold the whole batch into the block.
        block_b, ts = B, L
        grid = (1, 1)
    else:
        block_b = 1
        rows = max(spack, per_step_bytes // row_bytes)
        ts = L if rows >= L else max(spack, (rows // spack) * spack)
        grid = (pl.cdiv(L, ts), B)          # B innermost -> PE tile stays VMEM-resident

    # Double-buffered VMEM footprint of the chosen tiles + headroom for dropout
    # intermediates / internal scratch; capped well inside v7x's 64 MiB physical VMEM.
    footprint = 2 * (block_b * ts * lane * 2 * x_item + ts * lane * pe_item)
    vmem_limit = int(min(48 * _MIB, max(32 * _MIB, footprint + 16 * _MIB)))

    # ---- dropout constants (static) ---------------------------------------------------
    if training:
        assert 0.0 <= p < 1.0, "dropout prob must be in [0, 1)"
    drop_threshold = (
        min(int(round(p * (1 << 32))), (1 << 32) - 1) if (training and p > 0.0) else 0
    )
    inv_keep = 1.0 / (1.0 - p) if p < 1.0 else 0.0

    kernel = functools.partial(
        _pe_kernel, drop_threshold=drop_threshold, inv_keep=inv_keep, training=training
    )
    seed_arr = jnp.array([seed], dtype=jnp.int32)

    grid_spec = pltpu.PrefetchScalarGridSpec(
        num_scalar_prefetch=1,
        grid=grid,
        in_specs=[
            pl.BlockSpec((block_b, ts, lane), lambda s, b, seed_ref: (b, s, 0)),  # x tile
            pl.BlockSpec((1, ts, lane), lambda s, b, seed_ref: (0, s, 0)),        # pe: const over b
        ],
        out_specs=pl.BlockSpec((block_b, ts, lane), lambda s, b, seed_ref: (b, s, 0)),
    )

    out = pl.pallas_call(
        kernel,
        out_shape=jax.ShapeDtypeStruct(xr.shape, x.dtype),
        grid_spec=grid_spec,
        # x is operand 1 (after the scalar-prefetch seed); aliasing it with the output
        # lets XLA reuse the activation buffer when the caller can donate x.
        input_output_aliases=({1: 0} if donate_x else {}),
        compiler_params=pltpu.CompilerParams(
            # Both axes are independent; either can be sharded across the two v7x
            # TensorCores (row-tile axis is outermost and long for large inputs).
            dimension_semantics=("parallel", "parallel"),
            vmem_limit_bytes=vmem_limit,
        ),
    )(seed_arr, xr, per)

    if pad:
        out = out[:, :, :D]
    return out.reshape(B, S, D)


if __name__ == "__main__":
    # --- module-consistent small shapes (reshape-to-128 lane-dense path) ------------
    d_model = 32
    max_seq_length = 8
    batch = 2

    key = jax.random.PRNGKey(0)
    x = jax.random.normal(key, (batch, max_seq_length, d_model), dtype=jnp.float32)
    pe = build_sinusoidal_pe(d_model, max_seq_length)

    out = jax.block_until_ready(positional_encoding(x, pe, p=0.1, training=False))
    ref = x + pe
    assert jnp.allclose(out, ref, atol=1e-6), "mismatch vs reference (eval, small path)"

    # --- tiled multi-step path (forced tiny per-step budget) + donated-x aliasing ----
    d2, s2, b2 = 128, 24, 2
    x2 = jax.random.normal(jax.random.PRNGKey(1), (b2, s2, d2), dtype=jnp.float32)
    pe2 = build_sinusoidal_pe(d2, s2)
    out2 = jax.block_until_ready(
        positional_encoding(x2, pe2, p=0.1, training=False,
                            per_step_bytes=16 * 1024, donate_x=True)
    )
    assert jnp.allclose(out2, x2 + pe2, atol=1e-6), "mismatch vs reference (tiled path)"

    # --- padded lane-dense path (D not lane-dense, modest pad to 128) ----------------
    d3, s3, b3 = 120, 8, 2
    x3 = jax.random.normal(jax.random.PRNGKey(2), (b3, s3, d3), dtype=jnp.float32)
    pe3 = build_sinusoidal_pe(d3, s3)
    out3 = jax.block_until_ready(positional_encoding(x3, pe3, p=0.1, training=False))
    assert jnp.allclose(out3, x3 + pe3, atol=1e-6), "mismatch vs reference (padded path)"

    # --- bf16 activations: PE streamed in bf16, f32 in-register compute --------------
    d4, s4, b4 = 128, 16, 2
    x4 = jax.random.normal(jax.random.PRNGKey(3), (b4, s4, d4)).astype(jnp.bfloat16)
    pe4 = build_sinusoidal_pe(d4, s4)
    out4 = jax.block_until_ready(positional_encoding(x4, pe4, p=0.1, training=False))
    ref4 = (x4.astype(jnp.float32) + pe4.astype(jnp.bfloat16).astype(jnp.float32)
            ).astype(jnp.bfloat16)
    assert jnp.allclose(out4.astype(jnp.float32), ref4.astype(jnp.float32), atol=1e-2), \
        "mismatch vs reference (bf16 path)"

    # --- training-mode path (dropout via the on-chip PRNG) ---------------------------
    # TODO(synk): pltpu.prng_* has no CPU/interpret lowering, so this branch only runs
    # on a real TPU backend; eval mode above runs everywhere.
    if jax.default_backend() == "tpu":
        p = 0.1
        out_train = jax.block_until_ready(
            positional_encoding(x, pe, p=p, training=True, seed=42)
        )
        assert out_train.shape == x.shape
        expected = (x + pe) / (1.0 - p)
        kept_ok = jnp.isclose(out_train, expected, atol=1e-5)
        dropped_ok = jnp.isclose(out_train, 0.0, atol=1e-6)
        assert bool(jnp.all(kept_ok | dropped_ok)), "training-mode dropout values inconsistent"
        assert float(jnp.mean(dropped_ok.astype(jnp.float32))) < 0.9, \
            "training-mode dropout dropped nearly everything at p=0.1"

    print("KERNEL_OK")
</pallas_src>

<mosaic_0001>
module attributes {stable_mosaic.version = 11 : i64} {
  func.func @_pe_kernel(%arg0: i32, %arg1: i32, %arg2: memref<1xi32, #tpu.memory_space<smem>>, %arg3: memref<2x2x128xf32, #tpu.memory_space<vmem>>, %arg4: memref<1x2x128xf32, #tpu.memory_space<vmem>>, %arg5: memref<2x2x128xf32, #tpu.memory_space<vmem>>) attributes {dimension_semantics = [#tpu.dimension_semantics<parallel>, #tpu.dimension_semantics<parallel>], iteration_bounds = array<i64: 1, 1>, scalar_prefetch = 1 : i64, scratch_operands = 0 : i64, tpu.core_type = #tpu.core_type<tc>, window_params = [{transform_indices = @transform_0, window_bounds = array<i64: 2, 2, 128>}, {transform_indices = @transform_1, window_bounds = array<i64: 1, 2, 128>}, {transform_indices = @transform_2, window_bounds = array<i64: 2, 2, 128>}]} {
    %c0 = arith.constant 0 : index
    %c0_0 = arith.constant 0 : index
    %c0_1 = arith.constant 0 : index
    %0 = vector.load %arg3[%c0, %c0_0, %c0_1] : memref<2x2x128xf32, #tpu.memory_space<vmem>>, vector<2x2x128xf32>
    %c0_2 = arith.constant 0 : index
    %c0_3 = arith.constant 0 : index
    %c0_4 = arith.constant 0 : index
    %1 = vector.load %arg4[%c0_2, %c0_3, %c0_4] : memref<1x2x128xf32, #tpu.memory_space<vmem>>, vector<1x2x128xf32>
    %2 = vector.broadcast %1 : vector<1x2x128xf32> to vector<2x2x128xf32>
    %3 = arith.addf %0, %2 : vector<2x2x128xf32>
    %c0_5 = arith.constant 0 : index
    %c0_6 = arith.constant 0 : index
    %c0_7 = arith.constant 0 : index
    %4 = vector.load %arg5[%c0_5, %c0_6, %c0_7] : memref<2x2x128xf32, #tpu.memory_space<vmem>>, vector<2x2x128xf32>
    tpu.vector_store %arg5[%c0_5, %c0_6, %c0_7], %3 {strides = array<i32>} : memref<2x2x128xf32, #tpu.memory_space<vmem>>, vector<2x2x128xf32>,
    return
  }
  func.func @transform_0(%arg0: i32, %arg1: i32, %arg2: memref<1xi32, #tpu.memory_space<smem>>) -> (i32, i32, i32) {
    %c0_i32 = arith.constant 0 : i32
    %c0_i32_0 = arith.constant 0 : i32
    return %arg1, %arg0, %c0_i32 : i32, i32, i32
  }
  func.func @transform_1(%arg0: i32, %arg1: i32, %arg2: memref<1xi32, #tpu.memory_space<smem>>) -> (i32, i32, i32) {
    %c0_i32 = arith.constant 0 : i32
    %c0_i32_0 = arith.constant 0 : i32
    %c0_i32_1 = arith.constant 0 : i32
    return %c0_i32, %arg0, %c0_i32_0 : i32, i32, i32
  }
  func.func @transform_2(%arg0: i32, %arg1: i32, %arg2: memref<1xi32, #tpu.memory_space<smem>>) -> (i32, i32, i32) {
    %c0_i32 = arith.constant 0 : i32
    %c0_i32_0 = arith.constant 0 : i32
    return %arg1, %arg0, %c0_i32 : i32, i32, i32
  }
}

</mosaic_0001>

<llo_original>
// kernel: tpu_custom_call.1
$region0: #{tpu_custom_call.1}
  #allocation0 [shape = 'u32[]', space=smem, size = 0x4, offset = 0x4, fixed_abs, tag = 'smem constant byte address 0x4 - core index']
  #allocation1 [shape = 'u32[72,128]{1,0:T(1,128)}', space=vmem, size = 0x9000, scoped, tag = 'internal scratch']
  #allocation2 [shape = 's32[1]{0}', space=sflag, size = 0x4, scoped, tag = 'scoped memory for tpu_custom_call.1']
  #allocation3 [shape = 's32[1]{0:T(128)S(6)}', space=smem, size = 0x200, scoped, tag = 'prefetched SMEM operand 0']
  %s0 = inlined_call_operand.<no memory space> [shape: s32[1], index: 0, kind: input, shape index: {}]
  %s1 = inlined_call_operand.hbm [shape: f32[2,2,128], index: 1, kind: input, shape index: {}]
  %s2 = inlined_call_operand.vmem [shape: f32[1,2,128], index: 2, kind: input, shape index: {}]
  %s3 = inlined_call_operand.hbm [shape: f32[2,2,128], index: 3, kind: output, shape index: {}]
  %s4 = sld [smem:[#allocation0]]
  $region22: #{tpu_custom_call.1} parent=0
    _
  %s6 = ssub.s32 1, %s4
  %s7 = scalar_select 0, %s6, %s4
  %8 = sst [smem:[#allocation3]] %s0
  $region1: #{tpu_custom_call.1} parent=0
    #allocation4 [shape = 'u8[2048]{0}', space=vmem, size = 0x800, scoped, tag = 'input window, operand 1, single buffered']
    #allocation5 [shape = 's32[1]{0}', space=sflag, size = 0x4, scoped, tag = 'scoped memory for tpu_custom_call.1']
    #allocation6 [shape = 's32[1]{0}', space=sflag, size = 0x4, scoped, tag = 'scoped memory for tpu_custom_call.1']
    #allocation7 [shape = 'u8[2048]{0}', space=vmem, size = 0x800, scoped, tag = 'output window, operand 0, single buffered']
    %9 = vsyncpa [#allocation5], 0
    %10 = vsyncpa [#allocation6], 0
    // Predicated region
    $region2: #{tpu_custom_call.1} parent=1 // pred_check
      _
    $region3: #{tpu_custom_call.1} parent=1 // pred_check_branch
      %12 = sbr.rel (0) target = $region5
    $region4: #{tpu_custom_call.1} parent=1 // pred_region
      %14 = vsyncadd [#allocation5], 0
      %s15 = sshll.u32 %s1, 4
      %s16 = int_to_ptr.hbm [resolvable:$true] %s15
      %s17 = sshll.u32 [#allocation4], 4
      %s18 = int_to_ptr.vmem [resolvable:$true] %s17
      %23 = dma.hbm_to_vmem [thread:$0]  %s16, 64, %s18, [#allocation5], 32, 32, 2
    $region5: #{tpu_custom_call.1} parent=1 // pred_fallthru
      _
    // Predicated region
    $region6: #{tpu_custom_call.1} parent=1 // pred_check
      _
    $region7: #{tpu_custom_call.1} parent=1 // pred_check_branch
      %25 = sbr.rel (0) target = $region9
    $region8: #{tpu_custom_call.1} parent=1 // pred_region
      _
    $region9: #{tpu_custom_call.1} parent=1 // pred_fallthru
      _
    // Predicated region
    $region10: #{tpu_custom_call.1} parent=1 // pred_check
      _
    $region11: #{tpu_custom_call.1} parent=1 // pred_check_branch
      %27 = sbr.rel (0) target = $region13
    $region12: #{tpu_custom_call.1} parent=1 // pred_region
      %29 = dma.done [#allocation5], 64
    $region13: #{tpu_custom_call.1} parent=1 // pred_fallthru
      _
    %v30 = vld [vmem:[#allocation4] sm:$0x3]
    %v31 = vld [vmem:[#allocation4 + $0x2] sm:$0x3]
    %v32 = vld [vmem:[%s2] sm:$0x3]
    %v33 = vadd.f32 %v30, %v32
    %v34 = vadd.f32 %v31, %v32
    %35 = vst [vmem:[#allocation7] sm:$0x3] %v33
    %36 = vst [vmem:[#allocation7 + $0x2] sm:$0x3] %v34
    // Predicated region
    $region14: #{tpu_custom_call.1} parent=1 // pred_check
      _
    $region15: #{tpu_custom_call.1} parent=1 // pred_check_branch
      %38 = sbr.rel (0) target = $region17
    $region16: #{tpu_custom_call.1} parent=1 // pred_region
      %40 = vsyncadd [#allocation6], 0
      %s41 = sshll.u32 [#allocation7], 4
      %s42 = int_to_ptr.vmem [resolvable:$true] %s41
      %s43 = sshll.u32 %s3, 4
      %s44 = int_to_ptr.hbm [resolvable:$true] %s43
      %49 = dma.vmem_to_hbm [thread:$0]  %s42, 64, %s44, [#allocation6], 32, 32, 2
    $region17: #{tpu_custom_call.1} parent=1 // pred_fallthru
      _
    // Predicated region
    $region18: #{tpu_custom_call.1} parent=1 // pred_check
      _
    $region19: #{tpu_custom_call.1} parent=1 // pred_check_branch
      %51 = sbr.rel (0) target = $region21
    $region20: #{tpu_custom_call.1} parent=1 // pred_region
      %53 = dma.done [#allocation6], 64
    $region21: #{tpu_custom_call.1} parent=1 // pred_fallthru
      _
    %54 = vsyncpa [#allocation5], 1
    %55 = vsyncpa [#allocation6], 1

</llo_original>
